<compile_context>
chip_gen: v7x
topology: tpu7x:2x2x1
jax: 0.10.0
libtpu: 0.0.40
codegen_flags: <defaults>
</compile_context>

<pallas_src>
import jax
import jax.numpy as jnp
from jax.experimental import pallas as pl
from jax.experimental.pallas import tpu as pltpu


def _round_up(x, m):
    return ((x + m - 1) // m) * m


def _cdiv(a, b):
    return (a + b - 1) // b


# ---------------------------------------------------------------------------
# Kernels
# ---------------------------------------------------------------------------

def _make_fused_kernel(n_mid):
    """Both critics fused into one <=128-lane matmul chain (hidden_dim <= 64).

    Refs:
      obs   [TB, obs_dim]  f32   (batch-tiled; cast to bf16 in-kernel)
      w0    [obs_dim, H]   bf16
      b0    [1, H]         f32
      wmid  [n_mid, H, H]  bf16  (block-diagonal)        [only if n_mid > 0]
      bmid  [n_mid, 1, H]  f32                           [only if n_mid > 0]
      whead [H, 2]         bf16
      bhead [1, 2]         f32
      out   [TB, 2]        f32   (col 0 = V1, col 1 = V2)
    """
    if n_mid > 0:
        def kernel(obs_ref, w0_ref, b0_ref, wmid_ref, bmid_ref,
                   whead_ref, bhead_ref, out_ref):
            x = obs_ref[...].astype(jnp.bfloat16)
            acc = jnp.dot(x, w0_ref[...],
                          preferred_element_type=jnp.float32) + b0_ref[...]
            x = jnp.maximum(acc.astype(jnp.bfloat16), 0)
            for li in range(n_mid):                      # static unroll
                acc = jnp.dot(x, wmid_ref[li],
                              preferred_element_type=jnp.float32) + bmid_ref[li]
                x = jnp.maximum(acc.astype(jnp.bfloat16), 0)
            out = jnp.dot(x, whead_ref[...], preferred_element_type=jnp.float32)
            out_ref[...] = out + bhead_ref[...]
        return kernel

    def kernel(obs_ref, w0_ref, b0_ref, whead_ref, bhead_ref, out_ref):
        x = obs_ref[...].astype(jnp.bfloat16)
        acc = jnp.dot(x, w0_ref[...],
                      preferred_element_type=jnp.float32) + b0_ref[...]
        x = jnp.maximum(acc.astype(jnp.bfloat16), 0)
        out = jnp.dot(x, whead_ref[...], preferred_element_type=jnp.float32)
        out_ref[...] = out + bhead_ref[...]
    return kernel


def _make_stacked_kernel(n_mid):
    """Per-critic stacked weights (hidden_dim > 64): two dots per layer, no
    block-diagonal structural zeros.

    Refs:
      obs   [TB, obs_dim]        f32
      w0    [2, obs_dim, hp]     bf16
      b0    [2, 1, hp]           f32
      wmid  [n_mid, 2, hp, hp]   bf16                    [only if n_mid > 0]
      bmid  [n_mid, 2, 1, hp]    f32                     [only if n_mid > 0]
      whead [2, hp, 2]           bf16  (critic c only populates column c)
      bhead [1, 2]               f32
      out   [TB, 2]              f32
    """
    if n_mid > 0:
        def kernel(obs_ref, w0_ref, b0_ref, wmid_ref, bmid_ref,
                   whead_ref, bhead_ref, out_ref):
            x_in = obs_ref[...].astype(jnp.bfloat16)

            def one_critic(c):
                acc = jnp.dot(x_in, w0_ref[c],
                              preferred_element_type=jnp.float32) + b0_ref[c]
                x = jnp.maximum(acc.astype(jnp.bfloat16), 0)
                for li in range(n_mid):                  # static unroll
                    acc = jnp.dot(x, wmid_ref[li, c],
                                  preferred_element_type=jnp.float32) + bmid_ref[li, c]
                    x = jnp.maximum(acc.astype(jnp.bfloat16), 0)
                return jnp.dot(x, whead_ref[c],
                               preferred_element_type=jnp.float32)

            out_ref[...] = one_critic(0) + one_critic(1) + bhead_ref[...]
        return kernel

    def kernel(obs_ref, w0_ref, b0_ref, whead_ref, bhead_ref, out_ref):
        x_in = obs_ref[...].astype(jnp.bfloat16)

        def one_critic(c):
            acc = jnp.dot(x_in, w0_ref[c],
                          preferred_element_type=jnp.float32) + b0_ref[c]
            x = jnp.maximum(acc.astype(jnp.bfloat16), 0)
            return jnp.dot(x, whead_ref[c], preferred_element_type=jnp.float32)

        out_ref[...] = one_critic(0) + one_critic(1) + bhead_ref[...]
    return kernel


def _linear_kernel(obs_ref, w_ref, b_ref, out_ref):
    # hidden_depth == 0: each critic is Linear(obs_dim, 1) -> fused [obs_dim, 2].
    x = obs_ref[...].astype(jnp.bfloat16)
    out_ref[...] = jnp.dot(x, w_ref[...],
                           preferred_element_type=jnp.float32) + b_ref[...]


# ---------------------------------------------------------------------------
# Parameter fusion (host side, traced once)
# ---------------------------------------------------------------------------

def _fuse_params(params1, params2):
    """Fuse two per-critic parameter lists (W [in,out], b [1,out]).

    Zero padding keeps the math exact (padded rows/cols are zero, relu(0)=0,
    zero contributions accumulate to exactly 0 in f32)."""
    n_layers = len(params1)
    assert len(params2) == n_layers

    if n_layers == 1:  # hidden_depth == 0
        W = jnp.concatenate([params1[0][0], params2[0][0]], axis=1)   # [obs, 2]
        b = jnp.concatenate([params1[0][1], params2[0][1]], axis=1)   # [1, 2]
        return dict(kind="linear",
                    w=W.astype(jnp.bfloat16), b=b.astype(jnp.float32))

    obs_dim, h = params1[0][0].shape
    n_mid = n_layers - 2

    if 2 * h <= 128:
        # -------- fused block-diagonal chain (padding to 128 lanes is free) --
        H = 128
        w0 = jnp.zeros((obs_dim, H), jnp.float32)
        w0 = w0.at[:, :h].set(params1[0][0]).at[:, h:2 * h].set(params2[0][0])
        b0 = jnp.zeros((1, H), jnp.float32)
        b0 = b0.at[:, :h].set(params1[0][1]).at[:, h:2 * h].set(params2[0][1])

        wmid, bmid = [], []
        for li in range(n_mid):
            W1, B1 = params1[1 + li]
            W2, B2 = params2[1 + li]
            wm = jnp.zeros((H, H), jnp.float32)
            wm = wm.at[:h, :h].set(W1).at[h:2 * h, h:2 * h].set(W2)
            bm = jnp.zeros((1, H), jnp.float32)
            bm = bm.at[:, :h].set(B1).at[:, h:2 * h].set(B2)
            wmid.append(wm)
            bmid.append(bm)

        Wh1, Bh1 = params1[-1]
        Wh2, Bh2 = params2[-1]
        whead = jnp.zeros((H, 2), jnp.float32)
        whead = whead.at[:h, 0:1].set(Wh1).at[h:2 * h, 1:2].set(Wh2)
        bhead = jnp.concatenate([Bh1, Bh2], axis=1)                   # [1, 2]

        fused = dict(kind="fused", n_mid=n_mid, width=H,
                     w0=w0.astype(jnp.bfloat16), b0=b0.astype(jnp.float32),
                     whead=whead.astype(jnp.bfloat16),
                     bhead=bhead.astype(jnp.float32))
        if n_mid > 0:
            fused["wmid"] = jnp.stack(wmid).astype(jnp.bfloat16)      # [n_mid,H,H]
            fused["bmid"] = jnp.stack(bmid).astype(jnp.float32)       # [n_mid,1,H]
        return fused

    # -------- stacked per-critic (no block-diagonal zeros) -------------------
    hp = _round_up(h, 128)

    def pad_w(W, rows, cols):
        return jnp.zeros((rows, cols), jnp.float32).at[:W.shape[0], :W.shape[1]].set(W)

    def pad_b(B, cols):
        return jnp.zeros((1, cols), jnp.float32).at[:, :B.shape[1]].set(B)

    w0 = jnp.stack([pad_w(params1[0][0], obs_dim, hp),
                    pad_w(params2[0][0], obs_dim, hp)])               # [2,obs,hp]
    b0 = jnp.stack([pad_b(params1[0][1], hp),
                    pad_b(params2[0][1], hp)])                        # [2,1,hp]

    wmid, bmid = [], []
    for li in range(n_mid):
        wmid.append(jnp.stack([pad_w(params1[1 + li][0], hp, hp),
                               pad_w(params2[1 + li][0], hp, hp)]))   # [2,hp,hp]
        bmid.append(jnp.stack([pad_b(params1[1 + li][1], hp),
                               pad_b(params2[1 + li][1], hp)]))       # [2,1,hp]

    Wh1, Bh1 = params1[-1]
    Wh2, Bh2 = params2[-1]
    wh1 = jnp.zeros((hp, 2), jnp.float32).at[:h, 0:1].set(Wh1)
    wh2 = jnp.zeros((hp, 2), jnp.float32).at[:h, 1:2].set(Wh2)
    whead = jnp.stack([wh1, wh2])                                     # [2,hp,2]
    bhead = jnp.concatenate([Bh1, Bh2], axis=1)                       # [1,2]

    fused = dict(kind="stacked", n_mid=n_mid, width=hp,
                 w0=w0.astype(jnp.bfloat16), b0=b0.astype(jnp.float32),
                 whead=whead.astype(jnp.bfloat16),
                 bhead=bhead.astype(jnp.float32))
    if n_mid > 0:
        fused["wmid"] = jnp.stack(wmid).astype(jnp.bfloat16)          # [n_mid,2,hp,hp]
        fused["bmid"] = jnp.stack(bmid).astype(jnp.float32)           # [n_mid,2,1,hp]
    return fused


# ---------------------------------------------------------------------------
# Generation-aware planning
# ---------------------------------------------------------------------------

def _device_info():
    """(tensorcores_per_chip, usable_vmem_cap_bytes) with safe fallbacks."""
    try:
        kind = jax.devices()[0].device_kind.lower()
    except Exception:
        kind = ""
    if "7" in kind:                      # v7x: 2 TCs/chip, 64 MiB VMEM per TC
        return 2, 56 << 20
    if "v6" in kind or "v5" in kind:     # v5e/v6e: 1 TC, 128 MiB VMEM
        return 1, 100 << 20
    return 1, 56 << 20                   # unknown: conservative


def _plan_batch_tile(B, obs_dim, act_width, weight_bytes, vmem_budget, n_cores):
    """Pick (TB, padded_B). grid=1 on single-TC chips when it fits VMEM;
    split across TensorCores on v7x. TB multiple of 128 (min 16)."""
    Bp = _round_up(max(int(B), 1), 16)
    # VMEM bytes per batch row in one tile: f32 obs + f32 out (double-buffered
    # by the pipeline) + generous headroom for the f32 accumulator / bf16 acts.
    per_row = 2 * obs_dim * 4 + 2 * 2 * 4 + 4 * act_width * 4
    avail = max(vmem_budget - weight_bytes, 16 * per_row)
    tb_fit = max(16, (avail // per_row) // 16 * 16)

    align = 256 if n_cores > 1 else 128
    if Bp <= align:
        tb_pref = Bp if n_cores == 1 else max(16, _round_up(_cdiv(Bp, n_cores), 16))
    else:
        tb_pref = _round_up(_cdiv(Bp, n_cores), align)

    tb = min(tb_pref, tb_fit)
    if tb >= 128:
        tb = (tb // 128) * 128
    else:
        tb = max(16, (tb // 16) * 16)
    Bp = _round_up(Bp, tb)
    return tb, Bp


# ---------------------------------------------------------------------------
# Forward wrapper
# ---------------------------------------------------------------------------

def double_v_critic_forward(obs, params1, params2, *, block_b=None):
    """obs: [B, obs_dim] f32; params*: list of (W [in,out], b [1,out]).
    Returns (v1, v2), each [B, 1] f32."""
    B, obs_dim = obs.shape
    fused = _fuse_params(params1, params2)
    n_cores, vmem_cap = _device_info()

    if fused["kind"] == "linear":
        args = [fused["w"], fused["b"]]
        kernel = _linear_kernel
        width = 2
        flops_per_row = 2 * obs_dim * 2
    elif fused["kind"] == "fused":
        n_mid, H = fused["n_mid"], fused["width"]
        if n_mid > 0:
            args = [fused["w0"], fused["b0"], fused["wmid"], fused["bmid"],
                    fused["whead"], fused["bhead"]]
        else:
            args = [fused["w0"], fused["b0"], fused["whead"], fused["bhead"]]
        kernel = _make_fused_kernel(n_mid)
        width = H
        flops_per_row = 2 * (obs_dim * H + n_mid * H * H + H * 2)
    else:  # stacked per-critic
        n_mid, hp = fused["n_mid"], fused["width"]
        if n_mid > 0:
            args = [fused["w0"], fused["b0"], fused["wmid"], fused["bmid"],
                    fused["whead"], fused["bhead"]]
        else:
            args = [fused["w0"], fused["b0"], fused["whead"], fused["bhead"]]
        kernel = _make_stacked_kernel(n_mid)
        width = hp
        flops_per_row = 2 * 2 * (obs_dim * hp + n_mid * hp * hp + hp * 2)

    weight_bytes = int(sum(a.size * a.dtype.itemsize for a in args))

    if block_b is not None:
        TB = max(16, _round_up(int(block_b), 16))
        Bp = _round_up(max(B, 1), TB)
    else:
        TB, Bp = _plan_batch_tile(B, obs_dim, width, weight_bytes,
                                  int(vmem_cap * 0.8), n_cores)
    grid = (Bp // TB,)

    # Only the batch pad happens in the wrapper; the bf16 cast is in-kernel.
    obs_p = obs.astype(jnp.float32)
    if Bp != B:
        obs_p = jnp.pad(obs_p, ((0, Bp - B), (0, 0)))

    out_spec = pl.BlockSpec((TB, 2), lambda i: (i, 0))
    out_shape = jax.ShapeDtypeStruct((Bp, 2), jnp.float32)

    # Explicit VMEM budget: conservative (2x weights in case the compiler still
    # double-buffers them) + per-tile activation/IO footprint + slack.
    per_row = 2 * obs_dim * 4 + 2 * 2 * 4 + 4 * width * 4
    need = 2 * weight_bytes + TB * per_row + (8 << 20)
    vmem_limit = int(min(vmem_cap, max(32 << 20, need)))

    bytes_accessed = int(weight_bytes + Bp * obs_dim * 4 + Bp * 2 * 4)
    cost = pl.CostEstimate(flops=int(flops_per_row * Bp), transcendentals=0,
                           bytes_accessed=bytes_accessed)

    def run(single_buffer_weights):
        # Grid-invariant weight/bias operands: constant index_map so they are
        # fetched once (not per batch tile); single-buffered to halve their
        # resident VMEM footprint when supported.
        def invariant(arr):
            nd = arr.ndim
            if single_buffer_weights:
                return pl.BlockSpec(arr.shape, lambda i, _nd=nd: (0,) * _nd,
                                    pipeline_mode=pl.Buffered(1))
            return pl.BlockSpec(arr.shape, lambda i, _nd=nd: (0,) * _nd)

        in_specs = [pl.BlockSpec((TB, obs_dim), lambda i: (i, 0))] \
            + [invariant(a) for a in args]
        return pl.pallas_call(
            kernel,
            grid=grid,
            in_specs=in_specs,
            out_specs=out_spec,
            out_shape=out_shape,
            compiler_params=pltpu.CompilerParams(
                dimension_semantics=("parallel",),
                vmem_limit_bytes=vmem_limit),
            cost_estimate=cost,
        )(obs_p, *args)

    try:
        out = run(True)
    except Exception:
        # TODO(synk): pipeline_mode=pl.Buffered(1) rejected by this JAX build;
        # fall back to default (double-buffered) weight blocks.
        out = run(False)

    return out[:B, 0:1], out[:B, 1:2]


# ---------------------------------------------------------------------------
# Init + reference
# ---------------------------------------------------------------------------

def init_mlp_params(key, obs_dim, hidden_dim, output_dim, hidden_depth):
    """Same layer shapes as utils.mlp (scaled-normal init instead of orthogonal)."""
    if hidden_depth == 0:
        dims = [obs_dim, output_dim]
    else:
        dims = [obs_dim] + [hidden_dim] * hidden_depth + [output_dim]
    params = []
    for i in range(len(dims) - 1):
        key, kw = jax.random.split(key)
        W = jax.random.normal(kw, (dims[i], dims[i + 1]), jnp.float32) / jnp.sqrt(dims[i])
        b = jnp.zeros((1, dims[i + 1]), jnp.float32)
        params.append((W, b))
    return params, key


def mlp_ref(obs, params):
    """Pure-JAX reference mirroring the kernel's bf16-operand / f32-accumulate path."""
    x = obs.astype(jnp.bfloat16)
    n = len(params)
    for i, (W, b) in enumerate(params):
        acc = jnp.dot(x, W.astype(jnp.bfloat16),
                      preferred_element_type=jnp.float32) + b.astype(jnp.float32)
        if i < n - 1:
            x = jnp.maximum(acc, 0.0).astype(jnp.bfloat16)
        else:
            x = acc
    return x


if __name__ == "__main__":
    key = jax.random.PRNGKey(0)

    def run_case(name, B, obs_dim, hidden_dim, hidden_depth, key):
        key, k_obs = jax.random.split(key)
        obs = jax.random.normal(k_obs, (B, obs_dim), jnp.float32)
        params1, key = init_mlp_params(key, obs_dim, hidden_dim, 1, hidden_depth)
        params2, key = init_mlp_params(key, obs_dim, hidden_dim, 1, hidden_depth)

        v1, v2 = double_v_critic_forward(obs, params1, params2)
        v1 = jax.block_until_ready(v1)
        v2 = jax.block_until_ready(v2)

        r1, r2 = mlp_ref(obs, params1), mlp_ref(obs, params2)
        assert v1.shape == (B, 1) and v2.shape == (B, 1), name
        assert jnp.allclose(v1, r1, atol=2e-3, rtol=2e-3), name
        assert jnp.allclose(v2, r2, atol=2e-3, rtol=2e-3), name
        return key

    # fused (2*hidden <= 128) path, with and without mid layers
    key = run_case("fused_d2", 8, 16, 32, 2, key)
    key = run_case("fused_d1", 8, 16, 32, 1, key)
    # stacked per-critic path (2*hidden > 128)
    key = run_case("stacked_d2", 8, 16, 160, 2, key)
    key = run_case("stacked_d1", 8, 16, 160, 1, key)
    # hidden_depth == 0 -> single fused Linear(obs_dim, 2)
    key = run_case("linear_d0", 8, 16, 32, 0, key)

    print("KERNEL_OK")
</pallas_src>

<mosaic_0001>
module attributes {stable_mosaic.version = 11 : i64} {
  func.func @kernel(%arg0: i32, %arg1: memref<16x16xf32, #tpu.memory_space<vmem>>, %arg2: memref<16x128xbf16, #tpu.memory_space<vmem>>, %arg3: memref<1x128xf32, #tpu.memory_space<vmem>>, %arg4: memref<1x128x128xbf16, #tpu.memory_space<vmem>>, %arg5: memref<1x1x128xf32, #tpu.memory_space<vmem>>, %arg6: memref<128x2xbf16, #tpu.memory_space<vmem>>, %arg7: memref<1x2xf32, #tpu.memory_space<vmem>>, %arg8: memref<16x2xf32, #tpu.memory_space<vmem>>) attributes {dimension_semantics = [#tpu.dimension_semantics<parallel>], iteration_bounds = array<i64: 1>, scalar_prefetch = 0 : i64, scratch_operands = 0 : i64, tpu.core_type = #tpu.core_type<tc>, window_params = [{transform_indices = @transform_0, window_bounds = array<i64: 16, 16>}, {pipeline_mode = #tpu.pipeline_mode<synchronous>, transform_indices = @transform_1, window_bounds = array<i64: 16, 128>}, {pipeline_mode = #tpu.pipeline_mode<synchronous>, transform_indices = @transform_2, window_bounds = array<i64: 1, 128>}, {pipeline_mode = #tpu.pipeline_mode<synchronous>, transform_indices = @transform_3, window_bounds = array<i64: 1, 128, 128>}, {pipeline_mode = #tpu.pipeline_mode<synchronous>, transform_indices = @transform_4, window_bounds = array<i64: 1, 1, 128>}, {pipeline_mode = #tpu.pipeline_mode<synchronous>, transform_indices = @transform_5, window_bounds = array<i64: 128, 2>}, {pipeline_mode = #tpu.pipeline_mode<synchronous>, transform_indices = @transform_6, window_bounds = array<i64: 1, 2>}, {transform_indices = @transform_7, window_bounds = array<i64: 16, 2>}]} {
    %c0 = arith.constant 0 : index
    %c0_0 = arith.constant 0 : index
    %0 = vector.load %arg1[%c0, %c0_0] : memref<16x16xf32, #tpu.memory_space<vmem>>, vector<16x16xf32>
    %1 = arith.truncf %0 : vector<16x16xf32> to vector<16x16xbf16>
    %c0_1 = arith.constant 0 : index
    %c0_2 = arith.constant 0 : index
    %2 = vector.load %arg2[%c0_1, %c0_2] : memref<16x128xbf16, #tpu.memory_space<vmem>>, vector<16x128xbf16>
    %cst = arith.constant dense<0.000000e+00> : vector<16x128xf32>
    %3 = tpu.matmul %1, %2, %cst {dimension_numbers = #tpu.dot_dimension_numbers<[1], [0], [0], [1], [0, 0, 1, 1], [], []>} : vector<16x16xbf16>, vector<16x128xbf16>, vector<16x128xf32> -> vector<16x128xf32>
    %c0_3 = arith.constant 0 : index
    %c0_4 = arith.constant 0 : index
    %4 = vector.load %arg3[%c0_3, %c0_4] : memref<1x128xf32, #tpu.memory_space<vmem>>, vector<1x128xf32>
    %5 = vector.broadcast %4 : vector<1x128xf32> to vector<16x128xf32>
    %6 = arith.addf %3, %5 : vector<16x128xf32>
    %7 = arith.truncf %6 : vector<16x128xf32> to vector<16x128xbf16>
    %cst_5 = arith.constant 0.000000e+00 : bf16
    %8 = vector.broadcast %cst_5 : bf16 to vector<16x128xbf16>
    %9 = arith.maximumf %7, %8 : vector<16x128xbf16>
    %c0_6 = arith.constant 0 : index
    %c0_7 = arith.constant 0 : index
    %c0_8 = arith.constant 0 : index
    %10 = vector.load %arg4[%c0_6, %c0_7, %c0_8] : memref<1x128x128xbf16, #tpu.memory_space<vmem>>, vector<1x128x128xbf16>
    %11 = vector.shape_cast %10 : vector<1x128x128xbf16> to vector<128x128xbf16>
    %cst_9 = arith.constant dense<0.000000e+00> : vector<16x128xf32>
    %12 = tpu.matmul %9, %11, %cst_9 {dimension_numbers = #tpu.dot_dimension_numbers<[1], [0], [0], [1], [0, 0, 1, 1], [], []>} : vector<16x128xbf16>, vector<128x128xbf16>, vector<16x128xf32> -> vector<16x128xf32>
    %c0_10 = arith.constant 0 : index
    %c0_11 = arith.constant 0 : index
    %c0_12 = arith.constant 0 : index
    %13 = vector.load %arg5[%c0_10, %c0_11, %c0_12] : memref<1x1x128xf32, #tpu.memory_space<vmem>>, vector<1x1x128xf32>
    %14 = vector.shape_cast %13 : vector<1x1x128xf32> to vector<1x128xf32>
    %15 = vector.broadcast %14 : vector<1x128xf32> to vector<16x128xf32>
    %16 = arith.addf %12, %15 : vector<16x128xf32>
    %17 = arith.truncf %16 : vector<16x128xf32> to vector<16x128xbf16>
    %cst_13 = arith.constant 0.000000e+00 : bf16
    %18 = vector.broadcast %cst_13 : bf16 to vector<16x128xbf16>
    %19 = arith.maximumf %17, %18 : vector<16x128xbf16>
    %c0_14 = arith.constant 0 : index
    %c0_15 = arith.constant 0 : index
    %20 = vector.load %arg6[%c0_14, %c0_15] : memref<128x2xbf16, #tpu.memory_space<vmem>>, vector<128x2xbf16>
    %cst_16 = arith.constant dense<0.000000e+00> : vector<16x2xf32>
    %21 = tpu.matmul %19, %20, %cst_16 {dimension_numbers = #tpu.dot_dimension_numbers<[1], [0], [0], [1], [0, 0, 1, 1], [], []>} : vector<16x128xbf16>, vector<128x2xbf16>, vector<16x2xf32> -> vector<16x2xf32>
    %c0_17 = arith.constant 0 : index
    %c0_18 = arith.constant 0 : index
    %22 = vector.load %arg7[%c0_17, %c0_18] : memref<1x2xf32, #tpu.memory_space<vmem>>, vector<1x2xf32>
    %23 = vector.broadcast %22 : vector<1x2xf32> to vector<16x2xf32>
    %24 = arith.addf %21, %23 : vector<16x2xf32>
    %c0_19 = arith.constant 0 : index
    %c0_20 = arith.constant 0 : index
    %25 = vector.load %arg8[%c0_19, %c0_20] : memref<16x2xf32, #tpu.memory_space<vmem>>, vector<16x2xf32>
    tpu.vector_store %arg8[%c0_19, %c0_20], %24 {strides = array<i32>} : memref<16x2xf32, #tpu.memory_space<vmem>>, vector<16x2xf32>,
    return
  }
  func.func @transform_0(%arg0: i32) -> (i32, i32) {
    %c0_i32 = arith.constant 0 : i32
    %c0_i32_0 = arith.constant 0 : i32
    return %arg0, %c0_i32 : i32, i32
  }
  func.func @transform_1(%arg0: i32) -> (i32, i32) {
    %c0_i32 = arith.constant 0 : i32
    %c0_i32_0 = arith.constant 0 : i32
    %c0_i32_1 = arith.constant 0 : i32
    return %c0_i32, %c0_i32_0 : i32, i32
  }
  func.func @transform_2(%arg0: i32) -> (i32, i32) {
    %c0_i32 = arith.constant 0 : i32
    %c0_i32_0 = arith.constant 0 : i32
    %c0_i32_1 = arith.constant 0 : i32
    return %c0_i32, %c0_i32_0 : i32, i32
  }
  func.func @transform_3(%arg0: i32) -> (i32, i32, i32) {
    %c0_i32 = arith.constant 0 : i32
    %c0_i32_0 = arith.constant 0 : i32
    %c0_i32_1 = arith.constant 0 : i32
    %c0_i32_2 = arith.constant 0 : i32
    return %c0_i32, %c0_i32_0, %c0_i32_1 : i32, i32, i32
  }
  func.func @transform_4(%arg0: i32) -> (i32, i32, i32) {
    %c0_i32 = arith.constant 0 : i32
    %c0_i32_0 = arith.constant 0 : i32
    %c0_i32_1 = arith.constant 0 : i32
    %c0_i32_2 = arith.constant 0 : i32
    return %c0_i32, %c0_i32_0, %c0_i32_1 : i32, i32, i32
  }
  func.func @transform_5(%arg0: i32) -> (i32, i32) {
    %c0_i32 = arith.constant 0 : i32
    %c0_i32_0 = arith.constant 0 : i32
    %c0_i32_1 = arith.constant 0 : i32
    return %c0_i32, %c0_i32_0 : i32, i32
  }
  func.func @transform_6(%arg0: i32) -> (i32, i32) {
    %c0_i32 = arith.constant 0 : i32
    %c0_i32_0 = arith.constant 0 : i32
    %c0_i32_1 = arith.constant 0 : i32
    return %c0_i32, %c0_i32_0 : i32, i32
  }
  func.func @transform_7(%arg0: i32) -> (i32, i32) {
    %c0_i32 = arith.constant 0 : i32
    %c0_i32_0 = arith.constant 0 : i32
    return %arg0, %c0_i32 : i32, i32
  }
}

module attributes {stable_mosaic.version = 11 : i64} {
  func.func @kernel(%arg0: i32, %arg1: memref<16x16xf32, #tpu.memory_space<vmem>>, %arg2: memref<16x128xbf16, #tpu.memory_space<vmem>>, %arg3: memref<1x128xf32, #tpu.memory_space<vmem>>, %arg4: memref<1x128x128xbf16, #tpu.memory_space<vmem>>, %arg5: memref<1x1x128xf32, #tpu.memory_space<vmem>>, %arg6: memref<128x2xbf16, #tpu.memory_space<vmem>>, %arg7: memref<1x2xf32, #tpu.memory_space<vmem>>, %arg8: memref<16x2xf32, #tpu.memory_space<vmem>>) attributes {dimension_semantics = [#tpu.dimension_semantics<parallel>], iteration_bounds = array<i64: 1>, scalar_prefetch = 0 : i64, scratch_operands = 0 : i64, tpu.core_type = #tpu.core_type<tc>, window_params = [{transform_indices = @transform_0, window_bounds = array<i64: 16, 16>}, {pipeline_mode = #tpu.pipeline_mode<synchronous>, transform_indices = @transform_1, window_bounds = array<i64: 16, 128>}, {pipeline_mode = #tpu.pipeline_mode<synchronous>, transform_indices = @transform_2, window_bounds = array<i64: 1, 128>}, {pipeline_mode = #tpu.pipeline_mode<synchronous>, transform_indices = @transform_3, window_bounds = array<i64: 1, 128, 128>}, {pipeline_mode = #tpu.pipeline_mode<synchronous>, transform_indices = @transform_4, window_bounds = array<i64: 1, 1, 128>}, {pipeline_mode = #tpu.pipeline_mode<synchronous>, transform_indices = @transform_5, window_bounds = array<i64: 128, 2>}, {pipeline_mode = #tpu.pipeline_mode<synchronous>, transform_indices = @transform_6, window_bounds = array<i64: 1, 2>}, {transform_indices = @transform_7, window_bounds = array<i64: 16, 2>}]} {
    %c0 = arith.constant 0 : index
    %c0_0 = arith.constant 0 : index
    %0 = vector.load %arg1[%c0, %c0_0] : memref<16x16xf32, #tpu.memory_space<vmem>>, vector<16x16xf32>
    %1 = arith.truncf %0 : vector<16x16xf32> to vector<16x16xbf16>
    %c0_1 = arith.constant 0 : index
    %c0_2 = arith.constant 0 : index
    %2 = vector.load %arg2[%c0_1, %c0_2] : memref<16x128xbf16, #tpu.memory_space<vmem>>, vector<16x128xbf16>
    %cst = arith.constant dense<0.000000e+00> : vector<16x128xf32>
    %3 = tpu.matmul %1, %2, %cst {dimension_numbers = #tpu.dot_dimension_numbers<[1], [0], [0], [1], [0, 0, 1, 1], [], []>} : vector<16x16xbf16>, vector<16x128xbf16>, vector<16x128xf32> -> vector<16x128xf32>
    %c0_3 = arith.constant 0 : index
    %c0_4 = arith.constant 0 : index
    %4 = vector.load %arg3[%c0_3, %c0_4] : memref<1x128xf32, #tpu.memory_space<vmem>>, vector<1x128xf32>
    %5 = vector.broadcast %4 : vector<1x128xf32> to vector<16x128xf32>
    %6 = arith.addf %3, %5 : vector<16x128xf32>
    %7 = arith.truncf %6 : vector<16x128xf32> to vector<16x128xbf16>
    %cst_5 = arith.constant 0.000000e+00 : bf16
    %8 = vector.broadcast %cst_5 : bf16 to vector<16x128xbf16>
    %9 = arith.maximumf %7, %8 : vector<16x128xbf16>
    %c0_6 = arith.constant 0 : index
    %c0_7 = arith.constant 0 : index
    %c0_8 = arith.constant 0 : index
    %10 = vector.load %arg4[%c0_6, %c0_7, %c0_8] : memref<1x128x128xbf16, #tpu.memory_space<vmem>>, vector<1x128x128xbf16>
    %11 = vector.shape_cast %10 : vector<1x128x128xbf16> to vector<128x128xbf16>
    %cst_9 = arith.constant dense<0.000000e+00> : vector<16x128xf32>
    %12 = tpu.matmul %9, %11, %cst_9 {dimension_numbers = #tpu.dot_dimension_numbers<[1], [0], [0], [1], [0, 0, 1, 1], [], []>} : vector<16x128xbf16>, vector<128x128xbf16>, vector<16x128xf32> -> vector<16x128xf32>
    %c0_10 = arith.constant 0 : index
    %c0_11 = arith.constant 0 : index
    %c0_12 = arith.constant 0 : index
    %13 = vector.load %arg5[%c0_10, %c0_11, %c0_12] : memref<1x1x128xf32, #tpu.memory_space<vmem>>, vector<1x1x128xf32>
    %14 = vector.shape_cast %13 : vector<1x1x128xf32> to vector<1x128xf32>
    %15 = vector.broadcast %14 : vector<1x128xf32> to vector<16x128xf32>
    %16 = arith.addf %12, %15 : vector<16x128xf32>
    %17 = arith.truncf %16 : vector<16x128xf32> to vector<16x128xbf16>
    %cst_13 = arith.constant 0.000000e+00 : bf16
    %18 = vector.broadcast %cst_13 : bf16 to vector<16x128xbf16>
    %19 = arith.maximumf %17, %18 : vector<16x128xbf16>
    %c0_14 = arith.constant 0 : index
    %c0_15 = arith.constant 0 : index
    %20 = vector.load %arg6[%c0_14, %c0_15] : memref<128x2xbf16, #tpu.memory_space<vmem>>, vector<128x2xbf16>
    %cst_16 = arith.constant dense<0.000000e+00> : vector<16x2xf32>
    %21 = tpu.matmul %19, %20, %cst_16 {dimension_numbers = #tpu.dot_dimension_numbers<[1], [0], [0], [1], [0, 0, 1, 1], [], []>} : vector<16x128xbf16>, vector<128x2xbf16>, vector<16x2xf32> -> vector<16x2xf32>
    %c0_17 = arith.constant 0 : index
    %c0_18 = arith.constant 0 : index
    %22 = vector.load %arg7[%c0_17, %c0_18] : memref<1x2xf32, #tpu.memory_space<vmem>>, vector<1x2xf32>
    %23 = vector.broadcast %22 : vector<1x2xf32> to vector<16x2xf32>
    %24 = arith.addf %21, %23 : vector<16x2xf32>
    %c0_19 = arith.constant 0 : index
    %c0_20 = arith.constant 0 : index
    %25 = vector.load %arg8[%c0_19, %c0_20] : memref<16x2xf32, #tpu.memory_space<vmem>>, vector<16x2xf32>
    tpu.vector_store %arg8[%c0_19, %c0_20], %24 {strides = array<i32>} : memref<16x2xf32, #tpu.memory_space<vmem>>, vector<16x2xf32>,
    return
  }
  func.func @transform_0(%arg0: i32) -> (i32, i32) {
    %c0_i32 = arith.constant 0 : i32
    %c0_i32_0 = arith.constant 0 : i32
    return %arg0, %c0_i32 : i32, i32
  }
  func.func @transform_1(%arg0: i32) -> (i32, i32) {
    %c0_i32 = arith.constant 0 : i32
    %c0_i32_0 = arith.constant 0 : i32
    %c0_i32_1 = arith.constant 0 : i32
    return %c0_i32, %c0_i32_0 : i32, i32
  }
  func.func @transform_2(%arg0: i32) -> (i32, i32) {
    %c0_i32 = arith.constant 0 : i32
    %c0_i32_0 = arith.constant 0 : i32
    %c0_i32_1 = arith.constant 0 : i32
    return %c0_i32, %c0_i32_0 : i32, i32
  }
  func.func @transform_3(%arg0: i32) -> (i32, i32, i32) {
    %c0_i32 = arith.constant 0 : i32
    %c0_i32_0 = arith.constant 0 : i32
    %c0_i32_1 = arith.constant 0 : i32
    %c0_i32_2 = arith.constant 0 : i32
    return %c0_i32, %c0_i32_0, %c0_i32_1 : i32, i32, i32
  }
  func.func @transform_4(%arg0: i32) -> (i32, i32, i32) {
    %c0_i32 = arith.constant 0 : i32
    %c0_i32_0 = arith.constant 0 : i32
    %c0_i32_1 = arith.constant 0 : i32
    %c0_i32_2 = arith.constant 0 : i32
    return %c0_i32, %c0_i32_0, %c0_i32_1 : i32, i32, i32
  }
  func.func @transform_5(%arg0: i32) -> (i32, i32) {
    %c0_i32 = arith.constant 0 : i32
    %c0_i32_0 = arith.constant 0 : i32
    %c0_i32_1 = arith.constant 0 : i32
    return %c0_i32, %c0_i32_0 : i32, i32
  }
  func.func @transform_6(%arg0: i32) -> (i32, i32) {
    %c0_i32 = arith.constant 0 : i32
    %c0_i32_0 = arith.constant 0 : i32
    %c0_i32_1 = arith.constant 0 : i32
    return %c0_i32, %c0_i32_0 : i32, i32
  }
  func.func @transform_7(%arg0: i32) -> (i32, i32) {
    %c0_i32 = arith.constant 0 : i32
    %c0_i32_0 = arith.constant 0 : i32
    return %arg0, %c0_i32 : i32, i32
  }
}

</mosaic_0001>

<llo_original>
// kernel: tpu_custom_call.1
$region0: #{tpu_custom_call.1}
  #allocation0 [shape = 'u32[]', space=smem, size = 0x4, offset = 0x4, fixed_abs, tag = 'smem constant byte address 0x4 - core index']
  #allocation1 [shape = 'u32[144,128]{1,0:T(1,128)}', space=vmem, size = 0x12000, scoped, tag = 'internal scratch']
  %s0 = inlined_call_operand.hbm [shape: f32[16,16], index: 0, kind: input, shape index: {}]
  %s1 = inlined_call_operand.vmem [shape: bf16[16,128], index: 1, kind: input, shape index: {}]
  %s2 = inlined_call_operand.vmem [shape: f32[1,128], index: 2, kind: input, shape index: {}]
  %s3 = inlined_call_operand.vmem [shape: bf16[1,128,128], index: 3, kind: input, shape index: {}]
  %s4 = inlined_call_operand.vmem [shape: f32[1,1,128], index: 4, kind: input, shape index: {}]
  %s5 = inlined_call_operand.vmem [shape: bf16[128,2], index: 5, kind: input, shape index: {}]
  %s6 = inlined_call_operand.vmem [shape: f32[1,2], index: 6, kind: input, shape index: {}]
  %s7 = inlined_call_operand.vmem [shape: f32[16,2], index: 7, kind: output, shape index: {}]
  %s8 = sld [smem:[#allocation0]]
  $region42: #{tpu_custom_call.1} parent=0
    _
  %s10 = ssub.s32 1, %s8
  %s11 = scalar_select 0, %s10, %s8
  $region1: #{tpu_custom_call.1} parent=0
    #allocation2 [shape = 'u8[8192]{0}', space=vmem, size = 0x2000, scoped, tag = 'input window, operand 0, single buffered']
    #allocation3 [shape = 's32[1]{0}', space=sflag, size = 0x4, scoped, tag = 'scoped memory for tpu_custom_call.1']
    %12 = vsyncpa [#allocation3], 0
    // Predicated region
    $region2: #{tpu_custom_call.1} parent=1 // pred_check
      _
    $region3: #{tpu_custom_call.1} parent=1 // pred_check_branch
      %14 = sbr.rel (0) target = $region5
    $region4: #{tpu_custom_call.1} parent=1 // pred_region
      %s16 = ssub.s32 256, 256
      %17 = vsyncadd [#allocation3], %s16
      %s18 = sshll.u32 [#allocation2], 4
      %s19 = int_to_ptr.vmem [resolvable:$true] %s18
      %24 = dma.hbm_to_vmem [thread:$0]  %s0, 256, %s19, [#allocation3], 128, 128, 8
    $region5: #{tpu_custom_call.1} parent=1 // pred_fallthru
      _
    // Predicated region
    $region6: #{tpu_custom_call.1} parent=1 // pred_check
      _
    $region7: #{tpu_custom_call.1} parent=1 // pred_check_branch
      %26 = sbr.rel (0) target = $region9
    $region8: #{tpu_custom_call.1} parent=1 // pred_region
      _
    $region9: #{tpu_custom_call.1} parent=1 // pred_fallthru
      _
    // Predicated region
    $region10: #{tpu_custom_call.1} parent=1 // pred_check
      _
    $region11: #{tpu_custom_call.1} parent=1 // pred_check_branch
      %28 = sbr.rel (0) target = $region13
    $region12: #{tpu_custom_call.1} parent=1 // pred_region
      _
    $region13: #{tpu_custom_call.1} parent=1 // pred_fallthru
      _
    // Predicated region
    $region14: #{tpu_custom_call.1} parent=1 // pred_check
      _
    $region15: #{tpu_custom_call.1} parent=1 // pred_check_branch
      %30 = sbr.rel (0) target = $region17
    $region16: #{tpu_custom_call.1} parent=1 // pred_region
      _
    $region17: #{tpu_custom_call.1} parent=1 // pred_fallthru
      _
    // Predicated region
    $region18: #{tpu_custom_call.1} parent=1 // pred_check
      _
    $region19: #{tpu_custom_call.1} parent=1 // pred_check_branch
      %32 = sbr.rel (0) target = $region21
    $region20: #{tpu_custom_call.1} parent=1 // pred_region
      _
    $region21: #{tpu_custom_call.1} parent=1 // pred_fallthru
      _
    // Predicated region
    $region22: #{tpu_custom_call.1} parent=1 // pred_check
      _
    $region23: #{tpu_custom_call.1} parent=1 // pred_check_branch
      %34 = sbr.rel (0) target = $region25
    $region24: #{tpu_custom_call.1} parent=1 // pred_region
      _
    $region25: #{tpu_custom_call.1} parent=1 // pred_fallthru
      _
    // Predicated region
    $region26: #{tpu_custom_call.1} parent=1 // pred_check
      _
    $region27: #{tpu_custom_call.1} parent=1 // pred_check_branch
      %36 = sbr.rel (0) target = $region29
    $region28: #{tpu_custom_call.1} parent=1 // pred_region
      _
    $region29: #{tpu_custom_call.1} parent=1 // pred_fallthru
      _
    // Predicated region
    $region30: #{tpu_custom_call.1} parent=1 // pred_check
      _
    $region31: #{tpu_custom_call.1} parent=1 // pred_check_branch
      %38 = sbr.rel (0) target = $region33
    $region32: #{tpu_custom_call.1} parent=1 // pred_region
      %39 = dma.done [#allocation3], 256
    $region33: #{tpu_custom_call.1} parent=1 // pred_fallthru
      _
    %v41 = vld [vmem:[#allocation2] sm:$0xff]
    %v42 = vld [vmem:[#allocation2 + $0x8] sm:$0xff]
    %v43 = vpack.c.bf16 %v42, %v41
    %v44 = vld [vmem:[%s1] sm:$0xf]
    %v45 = vld [vmem:[%s1 + $0x4] sm:$0xf]
    %v46 = vld [vmem:[%s2] sm:$0x1]
    %v48 = vlaneseq
    %v49 = vshrl.u32 %v48, 7
    %v50 = vsub.s32 0, %v49
    %v51 = vrot.slane %v46, %v50
    %v55 = vunpack.c.l.b16 %v44
    %v56 = vunpack.c.l.b16 %v45
    %v57 = vpack.c.b16 %v56, %v55
    %vm59 = vcmask 130048
    %v61 = vsel %vm59, %v43, 0
    %63 = vmatprep.subr.bf16.mxu0 0
    %64 = vmatpush1.bf16.msra.mxu0 %v57
    %65 = vmatprep.subr.bf16.mxu0 0
    %66 = vmatpush1.bf16.msra.mxu0 0
    %67 = vmatprep.subr.bf16.mxu0 0
    %68 = vmatpush1.bf16.msra.mxu0 0
    %69 = vmatprep.subr.bf16.mxu0 0
    %70 = vmatpush1.bf16.msra.mxu0 0
    %71 = vmatprep.subr.bf16.mxu0 0
    %72 = vmatpush1.bf16.msra.mxu0 0
    %73 = vmatprep.subr.bf16.mxu0 0
    %74 = vmatpush1.bf16.msra.mxu0 0
    %75 = vmatprep.subr.bf16.mxu0 0
    %76 = vmatpush1.bf16.msra.mxu0 0
    %77 = vmatprep.subr.bf16.mxu0 0
    %78 = vmatpush1.bf16.msra.mxu0 0
    %79 = vmatprep.subr.bf16.mxu0 0
    %80 = vmatpush1.bf16.msra.mxu0 0
    %81 = vmatprep.subr.bf16.mxu0 0
    %82 = vmatpush1.bf16.msra.mxu0 0
    %83 = vmatprep.subr.bf16.mxu0 0
    %84 = vmatpush1.bf16.msra.mxu0 0
    %85 = vmatprep.subr.bf16.mxu0 0
    %86 = vmatpush1.bf16.msra.mxu0 0
    %87 = vmatprep.subr.bf16.mxu0 0
    %88 = vmatpush1.bf16.msra.mxu0 0
    %89 = vmatprep.subr.bf16.mxu0 0
    %90 = vmatpush1.bf16.msra.mxu0 0
    %91 = vmatprep.subr.bf16.mxu0 0
    %92 = vmatpush1.bf16.msra.mxu0 0
    %93 = vmatprep.subr.bf16.mxu0 0
    %94 = vmatpush1.bf16.msra.mxu0 0
    %95 = vmatprep.mubr.bf16.mxu0 0
    %96 = vmatmul.mubr.bf16.gmra.mrb[0].mxu0 %v61
    %v97 = vpop.f32.mrb[0].mxu0
    %v98 = vadd.f32 %v51, %v97
    %v99 = vpop.f32.mrb[0].mxu0
    %v100 = vpop.f32.mrb[0].mxu0
    %v101 = vadd.f32 %v51, %v100
    %v102 = vpop.f32.mrb[0].mxu0
    %103 = vdwg.mxu0
    %v104 = vpack.c.bf16 %v101, %v98
    %v105 = vmax.bf16 %v104, 0
    %v106 = vld [vmem:[%s3] sm:$0xf]
    %v107 = vld [vmem:[%s3 + $0x4] sm:$0xf]
    %v108 = vld [vmem:[%s3 + $0x8] sm:$0xf]
    %v109 = vld [vmem:[%s3 + $0xc] sm:$0xf]
    %v110 = vld [vmem:[%s3 + $0x10] sm:$0xf]
    %v111 = vld [vmem:[%s3 + $0x14] sm:$0xf]
    %v112 = vld [vmem:[%s3 + $0x18] sm:$0xf]
    %v113 = vld [vmem:[%s3 + $0x1c] sm:$0xf]
    %v114 = vld [vmem:[%s3 + $0x20] sm:$0xf]
    %v115 = vld [vmem:[%s3 + $0x24] sm:$0xf]
    %v116 = vld [vmem:[%s3 + $0x28] sm:$0xf]
    %v117 = vld [vmem:[%s3 + $0x2c] sm:$0xf]
    %v118 = vld [vmem:[%s3 + $0x30] sm:$0xf]
    %v119 = vld [vmem:[%s3 + $0x34] sm:$0xf]
    %v120 = vld [vmem:[%s3 + $0x38] sm:$0xf]
    %v121 = vld [vmem:[%s3 + $0x3c] sm:$0xf]
    %v122 = vld [vmem:[%s4] sm:$0x1]
    %v124 = vlaneseq
    %v125 = vshrl.u32 %v124, 7
    %v126 = vsub.s32 0, %v125
    %v127 = vrot.slane %v122, %v126
    %v145 = vunpack.c.l.b16 %v106
    %v146 = vunpack.c.l.b16 %v107
    %v147 = vunpack.c.l.b16 %v108
    %v148 = vunpack.c.l.b16 %v109
    %v149 = vunpack.c.l.b16 %v110
    %v150 = vunpack.c.l.b16 %v111
    %v151 = vunpack.c.l.b16 %v112
    %v152 = vunpack.c.l.b16 %v113
    %v153 = vunpack.c.l.b16 %v114
    %v154 = vunpack.c.l.b16 %v115
    %v155 = vunpack.c.l.b16 %v116
    %v156 = vunpack.c.l.b16 %v117
    %v157 = vunpack.c.l.b16 %v118
    %v158 = vunpack.c.l.b16 %v119
    %v159 = vunpack.c.l.b16 %v120
    %v160 = vunpack.c.l.b16 %v121
    %v161 = vpack.c.b16 %v146, %v145
    %v162 = vpack.c.b16 %v148, %v147
    %v163 = vpack.c.b16 %v150, %v149
    %v164 = vpack.c.b16 %v152, %v151
    %v165 = vpack.c.b16 %v154, %v153
    %v166 = vpack.c.b16 %v156, %v155
    %v167 = vpack.c.b16 %v158, %v157
    %v168 = vpack.c.b16 %v160, %v159
    %177 = vmatprep.subr.bf16.mxu0 0
    %178 = vmatpush1.bf16.msra.mxu0 %v161
    %179 = vmatprep.subr.bf16.mxu0 0
    %180 = vmatpush1.bf16.msra.mxu0 %v162
    %181 = vmatprep.subr.bf16.mxu0 0
    %182 = vmatpush1.bf16.msra.mxu0 %v163
    %183 = vmatprep.subr.bf16.mxu0 0
    %184 = vmatpush1.bf16.msra.mxu0 %v164
    %185 = vmatprep.subr.bf16.mxu0 0
    %186 = vmatpush1.bf16.msra.mxu0 %v165
    %187 = vmatprep.subr.bf16.mxu0 0
    %188 = vmatpush1.bf16.msra.mxu0 %v166
    %189 = vmatprep.subr.bf16.mxu0 0
    %190 = vmatpush1.bf16.msra.mxu0 %v167
    %191 = vmatprep.subr.bf16.mxu0 0
    %192 = vmatpush1.bf16.msra.mxu0 %v168
    %193 = vmatprep.subr.bf16.mxu0 0
    %194 = vmatpush1.bf16.msra.mxu0 0
    %195 = vmatprep.subr.bf16.mxu0 0
    %196 = vmatpush1.bf16.msra.mxu0 0
    %197 = vmatprep.subr.bf16.mxu0 0
    %198 = vmatpush1.bf16.msra.mxu0 0
    %199 = vmatprep.subr.bf16.mxu0 0
    %200 = vmatpush1.bf16.msra.mxu0 0
    %201 = vmatprep.subr.bf16.mxu0 0
    %202 = vmatpush1.bf16.msra.mxu0 0
    %203 = vmatprep.subr.bf16.mxu0 0
    %204 = vmatpush1.bf16.msra.mxu0 0
    %205 = vmatprep.subr.bf16.mxu0 0
    %206 = vmatpush1.bf16.msra.mxu0 0
    %207 = vmatprep.subr.bf16.mxu0 0
    %208 = vmatpush1.bf16.msra.mxu0 0
    %209 = vmatprep.mubr.bf16.mxu0 0
    %210 = vmatmul.mubr.bf16.gmra.mrb[0].mxu0 %v105
    %v211 = vpop.f32.mrb[0].mxu0
    %v212 = vadd.f32 %v127, %v211
    %v213 = vpop.f32.mrb[0].mxu0
    %v214 = vpop.f32.mrb[0].mxu0
    %v215 = vadd.f32 %v127, %v214
    %v216 = vpop.f32.mrb[0].mxu0
    %217 = vdwg.mxu0
    %v218 = vpack.c.bf16 %v215, %v212
    %v219 = vmax.bf16 %v218, 0
    %v220 = vld [vmem:[%s5] sm:$0xf]
    %v221 = vld [vmem:[%s5 + $0x4] sm:$0xf]
    %v222 = vld [vmem:[%s5 + $0x8] sm:$0xf]
    %v223 = vld [vmem:[%s5 + $0xc] sm:$0xf]
    %v224 = vld [vmem:[%s5 + $0x10] sm:$0xf]
    %v225 = vld [vmem:[%s5 + $0x14] sm:$0xf]
    %v226 = vld [vmem:[%s5 + $0x18] sm:$0xf]
    %v227 = vld [vmem:[%s5 + $0x1c] sm:$0xf]
    %v228 = vld [vmem:[%s5 + $0x20] sm:$0xf]
    %v229 = vld [vmem:[%s5 + $0x24] sm:$0xf]
    %v230 = vld [vmem:[%s5 + $0x28] sm:$0xf]
    %v231 = vld [vmem:[%s5 + $0x2c] sm:$0xf]
    %v232 = vld [vmem:[%s5 + $0x30] sm:$0xf]
    %v233 = vld [vmem:[%s5 + $0x34] sm:$0xf]
    %v234 = vld [vmem:[%s5 + $0x38] sm:$0xf]
    %v235 = vld [vmem:[%s5 + $0x3c] sm:$0xf]
    %v236 = vld [vmem:[%s6] sm:$0x1]
    %v238 = vlaneseq
    %v239 = vshrl.u32 %v238, 7
    %v240 = vsub.s32 0, %v239
    %v241 = vrot.slane %v236, %v240
    %v259 = vunpack.c.l.b16 %v220
    %v260 = vunpack.c.l.b16 %v221
    %v261 = vunpack.c.l.b16 %v222
    %v262 = vunpack.c.l.b16 %v223
    %v263 = vunpack.c.l.b16 %v224
    %v264 = vunpack.c.l.b16 %v225
    %v265 = vunpack.c.l.b16 %v226
    %v266 = vunpack.c.l.b16 %v227
    %v267 = vunpack.c.l.b16 %v228
    %v268 = vunpack.c.l.b16 %v229
    %v269 = vunpack.c.l.b16 %v230
    %v270 = vunpack.c.l.b16 %v231
    %v271 = vunpack.c.l.b16 %v232
    %v272 = vunpack.c.l.b16 %v233
    %v273 = vunpack.c.l.b16 %v234
    %v274 = vunpack.c.l.b16 %v235
    %v275 = vpack.c.b16 %v260, %v259
    %v276 = vpack.c.b16 %v262, %v261
    %v277 = vpack.c.b16 %v264, %v263
    %v278 = vpack.c.b16 %v266, %v265
    %v279 = vpack.c.b16 %v268, %v267
    %v280 = vpack.c.b16 %v270, %v269
    %v281 = vpack.c.b16 %v272, %v271
    %v282 = vpack.c.b16 %v274, %v273
    %291 = vmatprep.subr.bf16.mxu0 0
    %292 = vmatpush1.bf16.msra.mxu0 %v275
    %293 = vmatprep.subr.bf16.mxu0 0
    %294 = vmatpush1.bf16.msra.mxu0 %v276
    %295 = vmatprep.subr.bf16.mxu0 0
    %296 = vmatpush1.bf16.msra.mxu0 %v277
    %297 = vmatprep.subr.bf16.mxu0 0
    %298 = vmatpush1.bf16.msra.mxu0 %v278
    %299 = vmatprep.subr.bf16.mxu0 0
    %300 = vmatpush1.bf16.msra.mxu0 %v279
    %301 = vmatprep.subr.bf16.mxu0 0
    %302 = vmatpush1.bf16.msra.mxu0 %v280
    %303 = vmatprep.subr.bf16.mxu0 0
    %304 = vmatpush1.bf16.msra.mxu0 %v281
    %305 = vmatprep.subr.bf16.mxu0 0
    %306 = vmatpush1.bf16.msra.mxu0 %v282
    %307 = vmatprep.subr.bf16.mxu0 0
    %308 = vmatpush1.bf16.msra.mxu0 0
    %309 = vmatprep.subr.bf16.mxu0 0
    %310 = vmatpush1.bf16.msra.mxu0 0
    %311 = vmatprep.subr.bf16.mxu0 0
    %312 = vmatpush1.bf16.msra.mxu0 0
    %313 = vmatprep.subr.bf16.mxu0 0
    %314 = vmatpush1.bf16.msra.mxu0 0
    %315 = vmatprep.subr.bf16.mxu0 0
    %316 = vmatpush1.bf16.msra.mxu0 0
    %317 = vmatprep.subr.bf16.mxu0 0
    %318 = vmatpush1.bf16.msra.mxu0 0
    %319 = vmatprep.subr.bf16.mxu0 0
    %320 = vmatpush1.bf16.msra.mxu0 0
    %321 = vmatprep.subr.bf16.mxu0 0
    %322 = vmatpush1.bf16.msra.mxu0 0
    %323 = vmatprep.mubr.bf16.mxu0 0
    %324 = vmatmul.mubr.bf16.gmra.mrb[0].mxu0 %v219
    %v325 = vpop.f32.mrb[0].mxu0
    %v326 = vadd.f32 %v241, %v325
    %v327 = vpop.f32.mrb[0].mxu0
    %v328 = vpop.f32.mrb[0].mxu0
    %v329 = vadd.f32 %v241, %v328
    %v330 = vpop.f32.mrb[0].mxu0
    %331 = vdwg.mxu0
    %vm332 = vcmask 15360
    %333 = vst.msk [vmem:[%s7] sm:$0xff] %vm332, %v326
    %334 = vst.msk [vmem:[%s7 + $0x8] sm:$0xff] %vm332, %v329
    // Predicated region
    $region34: #{tpu_custom_call.1} parent=1 // pred_check
      _
    $region35: #{tpu_custom_call.1} parent=1 // pred_check_branch
      %336 = sbr.rel (0) target = $region37
    $region36: #{tpu_custom_call.1} parent=1 // pred_region
      _
    $region37: #{tpu_custom_call.1} parent=1 // pred_fallthru
      _
    // Predicated region
    $region38: #{tpu_custom_call.1} parent=1 // pred_check
      _
    $region39: #{tpu_custom_call.1} parent=1 // pred_check_branch
      %338 = sbr.rel (0) target = $region41
    $region40: #{tpu_custom_call.1} parent=1 // pred_region
      _
    $region41: #{tpu_custom_call.1} parent=1 // pred_fallthru
      _
    %339 = vsyncpa [#allocation3], 1

// kernel: tpu_custom_call.1
$region0: #{tpu_custom_call.1}
  #allocation0 [shape = 'u32[]', space=smem, size = 0x4, offset = 0x4, fixed_abs, tag = 'smem constant byte address 0x4 - core index']
  #allocation1 [shape = 'u32[144,128]{1,0:T(1,128)}', space=vmem, size = 0x12000, scoped, tag = 'internal scratch']
  %s0 = inlined_call_operand.hbm [shape: f32[16,16], index: 0, kind: input, shape index: {}]
  %s1 = inlined_call_operand.vmem [shape: bf16[16,128], index: 1, kind: input, shape index: {}]
  %s2 = inlined_call_operand.vmem [shape: f32[1,128], index: 2, kind: input, shape index: {}]
  %s3 = inlined_call_operand.vmem [shape: bf16[1,128,128], index: 3, kind: input, shape index: {}]
  %s4 = inlined_call_operand.vmem [shape: f32[1,1,128], index: 4, kind: input, shape index: {}]
  %s5 = inlined_call_operand.vmem [shape: bf16[128,2], index: 5, kind: input, shape index: {}]
  %s6 = inlined_call_operand.vmem [shape: f32[1,2], index: 6, kind: input, shape index: {}]
  %s7 = inlined_call_operand.vmem [shape: f32[16,2], index: 7, kind: output, shape index: {}]
  %s8 = sld [smem:[#allocation0]]
  $region42: #{tpu_custom_call.1} parent=0
    _
  %s10 = ssub.s32 1, %s8
  %s11 = scalar_select 0, %s10, %s8
  $region1: #{tpu_custom_call.1} parent=0
    #allocation2 [shape = 'u8[8192]{0}', space=vmem, size = 0x2000, scoped, tag = 'input window, operand 0, single buffered']
    #allocation3 [shape = 's32[1]{0}', space=sflag, size = 0x4, scoped, tag = 'scoped memory for tpu_custom_call.1']
    %12 = vsyncpa [#allocation3], 0
    // Predicated region
    $region2: #{tpu_custom_call.1} parent=1 // pred_check
      _
    $region3: #{tpu_custom_call.1} parent=1 // pred_check_branch
      %14 = sbr.rel (0) target = $region5
    $region4: #{tpu_custom_call.1} parent=1 // pred_region
      %s16 = ssub.s32 256, 256
      %17 = vsyncadd [#allocation3], %s16
      %s18 = sshll.u32 [#allocation2], 4
      %s19 = int_to_ptr.vmem [resolvable:$true] %s18
      %24 = dma.hbm_to_vmem [thread:$0]  %s0, 256, %s19, [#allocation3], 128, 128, 8
    $region5: #{tpu_custom_call.1} parent=1 // pred_fallthru
      _
    // Predicated region
    $region6: #{tpu_custom_call.1} parent=1 // pred_check
      _
    $region7: #{tpu_custom_call.1} parent=1 // pred_check_branch
      %26 = sbr.rel (0) target = $region9
    $region8: #{tpu_custom_call.1} parent=1 // pred_region
      _
    $region9: #{tpu_custom_call.1} parent=1 // pred_fallthru
      _
    // Predicated region
    $region10: #{tpu_custom_call.1} parent=1 // pred_check
      _
    $region11: #{tpu_custom_call.1} parent=1 // pred_check_branch
      %28 = sbr.rel (0) target = $region13
    $region12: #{tpu_custom_call.1} parent=1 // pred_region
      _
    $region13: #{tpu_custom_call.1} parent=1 // pred_fallthru
      _
    // Predicated region
    $region14: #{tpu_custom_call.1} parent=1 // pred_check
      _
    $region15: #{tpu_custom_call.1} parent=1 // pred_check_branch
      %30 = sbr.rel (0) target = $region17
    $region16: #{tpu_custom_call.1} parent=1 // pred_region
      _
    $region17: #{tpu_custom_call.1} parent=1 // pred_fallthru
      _
    // Predicated region
    $region18: #{tpu_custom_call.1} parent=1 // pred_check
      _
    $region19: #{tpu_custom_call.1} parent=1 // pred_check_branch
      %32 = sbr.rel (0) target = $region21
    $region20: #{tpu_custom_call.1} parent=1 // pred_region
      _
    $region21: #{tpu_custom_call.1} parent=1 // pred_fallthru
      _
    // Predicated region
    $region22: #{tpu_custom_call.1} parent=1 // pred_check
      _
    $region23: #{tpu_custom_call.1} parent=1 // pred_check_branch
      %34 = sbr.rel (0) target = $region25
    $region24: #{tpu_custom_call.1} parent=1 // pred_region
      _
    $region25: #{tpu_custom_call.1} parent=1 // pred_fallthru
      _
    // Predicated region
    $region26: #{tpu_custom_call.1} parent=1 // pred_check
      _
    $region27: #{tpu_custom_call.1} parent=1 // pred_check_branch
      %36 = sbr.rel (0) target = $region29
    $region28: #{tpu_custom_call.1} parent=1 // pred_region
      _
    $region29: #{tpu_custom_call.1} parent=1 // pred_fallthru
      _
    // Predicated region
    $region30: #{tpu_custom_call.1} parent=1 // pred_check
      _
    $region31: #{tpu_custom_call.1} parent=1 // pred_check_branch
      %38 = sbr.rel (0) target = $region33
    $region32: #{tpu_custom_call.1} parent=1 // pred_region
      %39 = dma.done [#allocation3], 256
    $region33: #{tpu_custom_call.1} parent=1 // pred_fallthru
      _
    %v41 = vld [vmem:[#allocation2] sm:$0xff]
    %v42 = vld [vmem:[#allocation2 + $0x8] sm:$0xff]
    %v43 = vpack.c.bf16 %v42, %v41
    %v44 = vld [vmem:[%s1] sm:$0xf]
    %v45 = vld [vmem:[%s1 + $0x4] sm:$0xf]
    %v46 = vld [vmem:[%s2] sm:$0x1]
    %v48 = vlaneseq
    %v49 = vshrl.u32 %v48, 7
    %v50 = vsub.s32 0, %v49
    %v51 = vrot.slane %v46, %v50
    %v55 = vunpack.c.l.b16 %v44
    %v56 = vunpack.c.l.b16 %v45
    %v57 = vpack.c.b16 %v56, %v55
    %vm59 = vcmask 130048
    %v61 = vsel %vm59, %v43, 0
    %63 = vmatprep.subr.bf16.mxu0 0
    %64 = vmatpush1.bf16.msra.mxu0 %v57
    %65 = vmatprep.subr.bf16.mxu0 0
    %66 = vmatpush1.bf16.msra.mxu0 0
    %67 = vmatprep.subr.bf16.mxu0 0
    %68 = vmatpush1.bf16.msra.mxu0 0
    %69 = vmatprep.subr.bf16.mxu0 0
    %70 = vmatpush1.bf16.msra.mxu0 0
    %71 = vmatprep.subr.bf16.mxu0 0
    %72 = vmatpush1.bf16.msra.mxu0 0
    %73 = vmatprep.subr.bf16.mxu0 0
    %74 = vmatpush1.bf16.msra.mxu0 0
    %75 = vmatprep.subr.bf16.mxu0 0
    %76 = vmatpush1.bf16.msra.mxu0 0
    %77 = vmatprep.subr.bf16.mxu0 0
    %78 = vmatpush1.bf16.msra.mxu0 0
    %79 = vmatprep.subr.bf16.mxu0 0
    %80 = vmatpush1.bf16.msra.mxu0 0
    %81 = vmatprep.subr.bf16.mxu0 0
    %82 = vmatpush1.bf16.msra.mxu0 0
    %83 = vmatprep.subr.bf16.mxu0 0
    %84 = vmatpush1.bf16.msra.mxu0 0
    %85 = vmatprep.subr.bf16.mxu0 0
    %86 = vmatpush1.bf16.msra.mxu0 0
    %87 = vmatprep.subr.bf16.mxu0 0
    %88 = vmatpush1.bf16.msra.mxu0 0
    %89 = vmatprep.subr.bf16.mxu0 0
    %90 = vmatpush1.bf16.msra.mxu0 0
    %91 = vmatprep.subr.bf16.mxu0 0
    %92 = vmatpush1.bf16.msra.mxu0 0
    %93 = vmatprep.subr.bf16.mxu0 0
    %94 = vmatpush1.bf16.msra.mxu0 0
    %95 = vmatprep.mubr.bf16.mxu0 0
    %96 = vmatmul.mubr.bf16.gmra.mrb[0].mxu0 %v61
    %v97 = vpop.f32.mrb[0].mxu0
    %v98 = vadd.f32 %v51, %v97
    %v99 = vpop.f32.mrb[0].mxu0
    %v100 = vpop.f32.mrb[0].mxu0
    %v101 = vadd.f32 %v51, %v100
    %v102 = vpop.f32.mrb[0].mxu0
    %103 = vdwg.mxu0
    %v104 = vpack.c.bf16 %v101, %v98
    %v105 = vmax.bf16 %v104, 0
    %v106 = vld [vmem:[%s3] sm:$0xf]
    %v107 = vld [vmem:[%s3 + $0x4] sm:$0xf]
    %v108 = vld [vmem:[%s3 + $0x8] sm:$0xf]
    %v109 = vld [vmem:[%s3 + $0xc] sm:$0xf]
    %v110 = vld [vmem:[%s3 + $0x10] sm:$0xf]
    %v111 = vld [vmem:[%s3 + $0x14] sm:$0xf]
    %v112 = vld [vmem:[%s3 + $0x18] sm:$0xf]
    %v113 = vld [vmem:[%s3 + $0x1c] sm:$0xf]
    %v114 = vld [vmem:[%s3 + $0x20] sm:$0xf]
    %v115 = vld [vmem:[%s3 + $0x24] sm:$0xf]
    %v116 = vld [vmem:[%s3 + $0x28] sm:$0xf]
    %v117 = vld [vmem:[%s3 + $0x2c] sm:$0xf]
    %v118 = vld [vmem:[%s3 + $0x30] sm:$0xf]
    %v119 = vld [vmem:[%s3 + $0x34] sm:$0xf]
    %v120 = vld [vmem:[%s3 + $0x38] sm:$0xf]
    %v121 = vld [vmem:[%s3 + $0x3c] sm:$0xf]
    %v122 = vld [vmem:[%s4] sm:$0x1]
    %v124 = vlaneseq
    %v125 = vshrl.u32 %v124, 7
    %v126 = vsub.s32 0, %v125
    %v127 = vrot.slane %v122, %v126
    %v145 = vunpack.c.l.b16 %v106
    %v146 = vunpack.c.l.b16 %v107
    %v147 = vunpack.c.l.b16 %v108
    %v148 = vunpack.c.l.b16 %v109
    %v149 = vunpack.c.l.b16 %v110
    %v150 = vunpack.c.l.b16 %v111
    %v151 = vunpack.c.l.b16 %v112
    %v152 = vunpack.c.l.b16 %v113
    %v153 = vunpack.c.l.b16 %v114
    %v154 = vunpack.c.l.b16 %v115
    %v155 = vunpack.c.l.b16 %v116
    %v156 = vunpack.c.l.b16 %v117
    %v157 = vunpack.c.l.b16 %v118
    %v158 = vunpack.c.l.b16 %v119
    %v159 = vunpack.c.l.b16 %v120
    %v160 = vunpack.c.l.b16 %v121
    %v161 = vpack.c.b16 %v146, %v145
    %v162 = vpack.c.b16 %v148, %v147
    %v163 = vpack.c.b16 %v150, %v149
    %v164 = vpack.c.b16 %v152, %v151
    %v165 = vpack.c.b16 %v154, %v153
    %v166 = vpack.c.b16 %v156, %v155
    %v167 = vpack.c.b16 %v158, %v157
    %v168 = vpack.c.b16 %v160, %v159
    %177 = vmatprep.subr.bf16.mxu0 0
    %178 = vmatpush1.bf16.msra.mxu0 %v161
    %179 = vmatprep.subr.bf16.mxu0 0
    %180 = vmatpush1.bf16.msra.mxu0 %v162
    %181 = vmatprep.subr.bf16.mxu0 0
    %182 = vmatpush1.bf16.msra.mxu0 %v163
    %183 = vmatprep.subr.bf16.mxu0 0
    %184 = vmatpush1.bf16.msra.mxu0 %v164
    %185 = vmatprep.subr.bf16.mxu0 0
    %186 = vmatpush1.bf16.msra.mxu0 %v165
    %187 = vmatprep.subr.bf16.mxu0 0
    %188 = vmatpush1.bf16.msra.mxu0 %v166
    %189 = vmatprep.subr.bf16.mxu0 0
    %190 = vmatpush1.bf16.msra.mxu0 %v167
    %191 = vmatprep.subr.bf16.mxu0 0
    %192 = vmatpush1.bf16.msra.mxu0 %v168
    %193 = vmatprep.subr.bf16.mxu0 0
    %194 = vmatpush1.bf16.msra.mxu0 0
    %195 = vmatprep.subr.bf16.mxu0 0
    %196 = vmatpush1.bf16.msra.mxu0 0
    %197 = vmatprep.subr.bf16.mxu0 0
    %198 = vmatpush1.bf16.msra.mxu0 0
    %199 = vmatprep.subr.bf16.mxu0 0
    %200 = vmatpush1.bf16.msra.mxu0 0
    %201 = vmatprep.subr.bf16.mxu0 0
    %202 = vmatpush1.bf16.msra.mxu0 0
    %203 = vmatprep.subr.bf16.mxu0 0
    %204 = vmatpush1.bf16.msra.mxu0 0
    %205 = vmatprep.subr.bf16.mxu0 0
    %206 = vmatpush1.bf16.msra.mxu0 0
    %207 = vmatprep.subr.bf16.mxu0 0
    %208 = vmatpush1.bf16.msra.mxu0 0
    %209 = vmatprep.mubr.bf16.mxu0 0
    %210 = vmatmul.mubr.bf16.gmra.mrb[0].mxu0 %v105
    %v211 = vpop.f32.mrb[0].mxu0
    %v212 = vadd.f32 %v127, %v211
    %v213 = vpop.f32.mrb[0].mxu0
    %v214 = vpop.f32.mrb[0].mxu0
    %v215 = vadd.f32 %v127, %v214
    %v216 = vpop.f32.mrb[0].mxu0
    %217 = vdwg.mxu0
    %v218 = vpack.c.bf16 %v215, %v212
    %v219 = vmax.bf16 %v218, 0
    %v220 = vld [vmem:[%s5] sm:$0xf]
    %v221 = vld [vmem:[%s5 + $0x4] sm:$0xf]
    %v222 = vld [vmem:[%s5 + $0x8] sm:$0xf]
    %v223 = vld [vmem:[%s5 + $0xc] sm:$0xf]
    %v224 = vld [vmem:[%s5 + $0x10] sm:$0xf]
    %v225 = vld [vmem:[%s5 + $0x14] sm:$0xf]
    %v226 = vld [vmem:[%s5 + $0x18] sm:$0xf]
    %v227 = vld [vmem:[%s5 + $0x1c] sm:$0xf]
    %v228 = vld [vmem:[%s5 + $0x20] sm:$0xf]
    %v229 = vld [vmem:[%s5 + $0x24] sm:$0xf]
    %v230 = vld [vmem:[%s5 + $0x28] sm:$0xf]
    %v231 = vld [vmem:[%s5 + $0x2c] sm:$0xf]
    %v232 = vld [vmem:[%s5 + $0x30] sm:$0xf]
    %v233 = vld [vmem:[%s5 + $0x34] sm:$0xf]
    %v234 = vld [vmem:[%s5 + $0x38] sm:$0xf]
    %v235 = vld [vmem:[%s5 + $0x3c] sm:$0xf]
    %v236 = vld [vmem:[%s6] sm:$0x1]
    %v238 = vlaneseq
    %v239 = vshrl.u32 %v238, 7
    %v240 = vsub.s32 0, %v239
    %v241 = vrot.slane %v236, %v240
    %v259 = vunpack.c.l.b16 %v220
    %v260 = vunpack.c.l.b16 %v221
    %v261 = vunpack.c.l.b16 %v222
    %v262 = vunpack.c.l.b16 %v223
    %v263 = vunpack.c.l.b16 %v224
    %v264 = vunpack.c.l.b16 %v225
    %v265 = vunpack.c.l.b16 %v226
    %v266 = vunpack.c.l.b16 %v227
    %v267 = vunpack.c.l.b16 %v228
    %v268 = vunpack.c.l.b16 %v229
    %v269 = vunpack.c.l.b16 %v230
    %v270 = vunpack.c.l.b16 %v231
    %v271 = vunpack.c.l.b16 %v232
    %v272 = vunpack.c.l.b16 %v233
    %v273 = vunpack.c.l.b16 %v234
    %v274 = vunpack.c.l.b16 %v235
    %v275 = vpack.c.b16 %v260, %v259
    %v276 = vpack.c.b16 %v262, %v261
    %v277 = vpack.c.b16 %v264, %v263
    %v278 = vpack.c.b16 %v266, %v265
    %v279 = vpack.c.b16 %v268, %v267
    %v280 = vpack.c.b16 %v270, %v269
    %v281 = vpack.c.b16 %v272, %v271
    %v282 = vpack.c.b16 %v274, %v273
    %291 = vmatprep.subr.bf16.mxu0 0
    %292 = vmatpush1.bf16.msra.mxu0 %v275
    %293 = vmatprep.subr.bf16.mxu0 0
    %294 = vmatpush1.bf16.msra.mxu0 %v276
    %295 = vmatprep.subr.bf16.mxu0 0
    %296 = vmatpush1.bf16.msra.mxu0 %v277
    %297 = vmatprep.subr.bf16.mxu0 0
    %298 = vmatpush1.bf16.msra.mxu0 %v278
    %299 = vmatprep.subr.bf16.mxu0 0
    %300 = vmatpush1.bf16.msra.mxu0 %v279
    %301 = vmatprep.subr.bf16.mxu0 0
    %302 = vmatpush1.bf16.msra.mxu0 %v280
    %303 = vmatprep.subr.bf16.mxu0 0
    %304 = vmatpush1.bf16.msra.mxu0 %v281
    %305 = vmatprep.subr.bf16.mxu0 0
    %306 = vmatpush1.bf16.msra.mxu0 %v282
    %307 = vmatprep.subr.bf16.mxu0 0
    %308 = vmatpush1.bf16.msra.mxu0 0
    %309 = vmatprep.subr.bf16.mxu0 0
    %310 = vmatpush1.bf16.msra.mxu0 0
    %311 = vmatprep.subr.bf16.mxu0 0
    %312 = vmatpush1.bf16.msra.mxu0 0
    %313 = vmatprep.subr.bf16.mxu0 0
    %314 = vmatpush1.bf16.msra.mxu0 0
    %315 = vmatprep.subr.bf16.mxu0 0
    %316 = vmatpush1.bf16.msra.mxu0 0
    %317 = vmatprep.subr.bf16.mxu0 0
    %318 = vmatpush1.bf16.msra.mxu0 0
    %319 = vmatprep.subr.bf16.mxu0 0
    %320 = vmatpush1.bf16.msra.mxu0 0
    %321 = vmatprep.subr.bf16.mxu0 0
    %322 = vmatpush1.bf16.msra.mxu0 0
    %323 = vmatprep.mubr.bf16.mxu0 0
    %324 = vmatmul.mubr.bf16.gmra.mrb[0].mxu0 %v219
    %v325 = vpop.f32.mrb[0].mxu0
    %v326 = vadd.f32 %v241, %v325
    %v327 = vpop.f32.mrb[0].mxu0
    %v328 = vpop.f32.mrb[0].mxu0
    %v329 = vadd.f32 %v241, %v328
    %v330 = vpop.f32.mrb[0].mxu0
    %331 = vdwg.mxu0
    %vm332 = vcmask 15360
    %333 = vst.msk [vmem:[%s7] sm:$0xff] %vm332, %v326
    %334 = vst.msk [vmem:[%s7 + $0x8] sm:$0xff] %vm332, %v329
    // Predicated region
    $region34: #{tpu_custom_call.1} parent=1 // pred_check
      _
    $region35: #{tpu_custom_call.1} parent=1 // pred_check_branch
      %336 = sbr.rel (0) target = $region37
    $region36: #{tpu_custom_call.1} parent=1 // pred_region
      _
    $region37: #{tpu_custom_call.1} parent=1 // pred_fallthru
      _
    // Predicated region
    $region38: #{tpu_custom_call.1} parent=1 // pred_check
      _
    $region39: #{tpu_custom_call.1} parent=1 // pred_check_branch
      %338 = sbr.rel (0) target = $region41
    $region40: #{tpu_custom_call.1} parent=1 // pred_region
      _
    $region41: #{tpu_custom_call.1} parent=1 // pred_fallthru
      _
    %339 = vsyncpa [#allocation3], 1

</llo_original>
